<compile_context>
chip_gen: v7x
topology: tpu7x:2x2x1
jax: 0.10.0
libtpu: 0.0.40
codegen_flags: <defaults>
</compile_context>

<pallas_src>
import jax
import jax.numpy as jnp
from jax.experimental import pallas as pl
from jax.experimental.pallas import tpu as pltpu

CIN, COUT, KH, KW = 16, 8, 3, 3
STRIDE = 2
EPS = 1e-5
TM = 512  # lane tile over the flattened output pixels (multiple of 128)


def _make_kernel(m_valid, n_tiles, pad_cols):
    """Fused conv-as-matmul + bias + hard-sigmoid + BN (batch stats)."""
    inv_m = 1.0 / float(m_valid)

    def kernel(w_ref, p_ref, prm_ref, o_ref):
        i = pl.program_id(0)
        b3 = prm_ref[:, 0:1]                                    # (C, 1) f32  (bias + 3)

        # MXU: (C, K) bf16 @ (K, TM) bf16 -> (C, TM) f32
        y = jnp.dot(w_ref[...], p_ref[...], preferred_element_type=jnp.float32)
        # hard-sigmoid with the "+3" folded into b3:  clip(x + b + 3, 0, 6) / 6
        y = jnp.clip(y + b3, 0.0, 6.0) * (1.0 / 6.0)
        # park this chunk in the resident output block (written exactly once)
        o_ref[i] = y

        @pl.when(i == n_tiles - 1)
        def _():
            gamma = prm_ref[:, 1:2]                             # (C, 1)
            beta = prm_ref[:, 2:3]                              # (C, 1)
            # padded patch columns are exactly zero -> activation == c there
            c = jnp.clip(b3, 0.0, 6.0) * (1.0 / 6.0)            # (C, 1)

            act = o_ref[...]                                    # (T, C, TM)
            s = jnp.sum(jnp.sum(act, axis=2, keepdims=True), axis=0)          # (C, 1)
            s2 = jnp.sum(jnp.sum(act * act, axis=2, keepdims=True), axis=0)   # (C, 1)
            mean = (s - pad_cols * c) * inv_m
            ex2 = (s2 - pad_cols * (c * c)) * inv_m
            inv = jax.lax.rsqrt(ex2 - mean * mean + EPS)

            # fold BN affine into one FMA over the whole resident block
            scale = gamma * inv                                 # (C, 1)
            shift = beta - mean * scale                         # (C, 1)
            o_ref[...] = act * scale + shift

    return kernel


@jax.jit
def model_forward(x, w, b, gamma, beta):
    """x: (N, CIN, H, W); w: (CIN, COUT, KH, KW) (PyTorch ConvTranspose2d layout)."""
    N, Cin, H, W = x.shape
    OH = (H - 1) * STRIDE + KH
    OW = (W - 1) * STRIDE + KW
    M = N * OH * OW
    K = CIN * KH * KW
    n_tiles = pl.cdiv(M, TM)
    Mpad = n_tiles * TM

    # ---- transposed conv -> im2col in ONE XLA op (zero-insert + pad + patches)
    # on bf16 data at DEFAULT precision (0/1 filters: exact data movement).
    # Feature index ordering of the output: cin*KH*KW + kh*KW + kw.
    xb = x.astype(jnp.bfloat16)
    patches = jax.lax.conv_general_dilated_patches(
        xb,
        filter_shape=(KH, KW),
        window_strides=(1, 1),
        padding=((KH - 1, KH - 1), (KW - 1, KW - 1)),
        lhs_dilation=(STRIDE, STRIDE),
        dimension_numbers=("NCHW", "OIHW", "NHWC"),
    )                                                     # (N, OH, OW, K) bf16
    # transposed, lane-dense layout for the kernel: (K, Mpad), zero-padded cols
    patches_t = patches.reshape(M, K).T
    patches_t = jnp.pad(patches_t, ((0, 0), (0, Mpad - M)))

    # flipped-kernel weight matrix, transposed orientation (COUT, K), bf16:
    #   wmat[co, ci*9 + kh*3 + kw] = w[ci, co, 2-kh, 2-kw]
    wf = w[:, :, ::-1, ::-1]                              # (Cin, Cout, KH, KW)
    wmat = wf.transpose(1, 0, 2, 3).reshape(COUT, K).astype(jnp.bfloat16)

    # packed per-channel params: col 0 = bias+3, col 1 = gamma, col 2 = beta
    prm = jnp.zeros((8, 128), jnp.float32)
    prm = prm.at[:COUT, 0].set(b.astype(jnp.float32) + 3.0)
    prm = prm.at[:COUT, 1].set(gamma.astype(jnp.float32))
    prm = prm.at[:COUT, 2].set(beta.astype(jnp.float32))

    # ---- single fused Pallas kernel, patch chunks streamed over the grid ----
    out3 = pl.pallas_call(
        _make_kernel(M, n_tiles, Mpad - M),
        out_shape=jax.ShapeDtypeStruct((n_tiles, COUT, TM), jnp.float32),
        grid=(n_tiles,),
        in_specs=[
            pl.BlockSpec((COUT, K), lambda i: (0, 0)),    # weights, VMEM-resident
            pl.BlockSpec((K, TM), lambda i: (0, i)),      # streamed patch chunk
            pl.BlockSpec((8, 128), lambda i: (0, 0)),     # packed params, resident
        ],
        out_specs=pl.BlockSpec((n_tiles, COUT, TM), lambda i: (0, 0, 0)),
        compiler_params=pltpu.CompilerParams(
            dimension_semantics=("arbitrary",)),          # sequential: stats accumulate
    )(wmat, patches_t, prm)

    # (T, C, TM) -> (C, M) -> (N, C, OH, OW)   (tiny: ~70 KB)
    out = out3.transpose(1, 0, 2).reshape(COUT, Mpad)[:, :M]
    out = out.reshape(COUT, N, OH, OW).transpose(1, 0, 2, 3)
    return out


def reference(x, w, b, gamma, beta):
    """Pure-JAX f32 reference (XLA conv path) for numerical check."""
    wt = jnp.transpose(w[:, :, ::-1, ::-1], (1, 0, 2, 3))     # (Cout, Cin, KH, KW)
    v1 = jax.lax.conv_general_dilated(
        x, wt, window_strides=(1, 1),
        padding=((KH - 1, KH - 1), (KW - 1, KW - 1)),
        lhs_dilation=(STRIDE, STRIDE),
        dimension_numbers=("NCHW", "OIHW", "NCHW"),
        precision=jax.lax.Precision.HIGHEST)
    v1 = v1 + b.reshape(1, COUT, 1, 1)
    v5 = jnp.clip(v1 + 3.0, 0.0, 6.0) / 6.0
    mean = v5.mean(axis=(0, 2, 3), keepdims=True)
    var = ((v5 - mean) ** 2).mean(axis=(0, 2, 3), keepdims=True)
    return ((v5 - mean) * jax.lax.rsqrt(var + EPS)
            * gamma.reshape(1, COUT, 1, 1) + beta.reshape(1, COUT, 1, 1))


if __name__ == "__main__":
    key = jax.random.PRNGKey(0)
    kx, kw_, kb = jax.random.split(key, 3)

    N, H, W = 2, 16, 16
    x1 = jax.random.normal(kx, (N, CIN, H, W), dtype=jnp.float32)
    w = jax.random.normal(kw_, (CIN, COUT, KH, KW), dtype=jnp.float32) * 0.1
    b = jax.random.normal(kb, (COUT,), dtype=jnp.float32) * 0.1
    gamma = jnp.ones((COUT,), dtype=jnp.float32)
    beta = jnp.zeros((COUT,), dtype=jnp.float32)

    out = jax.block_until_ready(model_forward(x1, w, b, gamma, beta))

    ref = reference(x1, w, b, gamma, beta)
    assert out.shape == (N, COUT, (H - 1) * STRIDE + KH, (W - 1) * STRIDE + KW)
    # bf16 MXU operands (f32 accumulation) per perf guidance -> slightly looser
    # tolerance vs the full-f32 reference.
    max_err = float(jnp.max(jnp.abs(out - ref)))
    assert jnp.allclose(out, ref, rtol=1e-2, atol=1e-2), max_err

    print("KERNEL_OK")
</pallas_src>

<mosaic_0001>
module attributes {stable_mosaic.version = 11 : i64} {
  func.func @kernel(%arg0: i32, %arg1: memref<8x144xbf16, #tpu.memory_space<vmem>>, %arg2: memref<144x512xbf16, #tpu.memory_space<vmem>>, %arg3: memref<8x128xf32, #tpu.memory_space<vmem>>, %arg4: memref<5x8x512xf32, #tpu.memory_space<vmem>>) attributes {dimension_semantics = [#tpu.dimension_semantics<arbitrary>], iteration_bounds = array<i64: 5>, scalar_prefetch = 0 : i64, scratch_operands = 0 : i64, tpu.core_type = #tpu.core_type<tc>, window_params = [{pipeline_mode = #tpu.pipeline_mode<synchronous>, transform_indices = @transform_0, window_bounds = array<i64: 8, 144>}, {transform_indices = @transform_1, window_bounds = array<i64: 144, 512>}, {pipeline_mode = #tpu.pipeline_mode<synchronous>, transform_indices = @transform_2, window_bounds = array<i64: 8, 128>}, {pipeline_mode = #tpu.pipeline_mode<synchronous>, transform_indices = @transform_3, window_bounds = array<i64: 5, 8, 512>}]} {
    %c0 = arith.constant 0 : index
    %c0_0 = arith.constant 0 : index
    %0 = vector.load %arg3[%c0, %c0_0] : memref<8x128xf32, #tpu.memory_space<vmem>>, vector<8x1xf32>
    %c0_1 = arith.constant 0 : index
    %c0_2 = arith.constant 0 : index
    %1 = vector.load %arg1[%c0_1, %c0_2] : memref<8x144xbf16, #tpu.memory_space<vmem>>, vector<8x144xbf16>
    %c0_3 = arith.constant 0 : index
    %c0_4 = arith.constant 0 : index
    %2 = vector.load %arg2[%c0_3, %c0_4] : memref<144x512xbf16, #tpu.memory_space<vmem>>, vector<144x512xbf16>
    %cst = arith.constant dense<0.000000e+00> : vector<8x512xf32>
    %3 = tpu.matmul %1, %2, %cst {dimension_numbers = #tpu.dot_dimension_numbers<[1], [0], [0], [1], [0, 0, 1, 1], [], []>} : vector<8x144xbf16>, vector<144x512xbf16>, vector<8x512xf32> -> vector<8x512xf32>
    %4 = vector.broadcast %0 : vector<8x1xf32> to vector<8x512xf32>
    %5 = arith.addf %3, %4 : vector<8x512xf32>
    %cst_5 = arith.constant 0.000000e+00 : f32
    %cst_6 = arith.constant 6.000000e+00 : f32
    %6 = vector.broadcast %cst_5 : f32 to vector<8x512xf32>
    %7 = arith.maximumf %6, %5 : vector<8x512xf32>
    %8 = vector.broadcast %cst_6 : f32 to vector<8x512xf32>
    %9 = arith.minimumf %8, %7 : vector<8x512xf32>
    %cst_7 = arith.constant 0.166666672 : f32
    %10 = vector.broadcast %cst_7 : f32 to vector<8x512xf32>
    %11 = arith.mulf %9, %10 : vector<8x512xf32>
    %12 = arith.index_cast %arg0 : i32 to index
    %c0_8 = arith.constant 0 : index
    %c0_9 = arith.constant 0 : index
    %13 = vector.load %arg4[%12, %c0_8, %c0_9] : memref<5x8x512xf32, #tpu.memory_space<vmem>>, vector<1x8x512xf32>
    %14 = vector.shape_cast %13 : vector<1x8x512xf32> to vector<8x512xf32>
    %15 = vector.shape_cast %11 : vector<8x512xf32> to vector<1x8x512xf32>
    tpu.vector_store %arg4[%12, %c0_8, %c0_9], %15 {strides = array<i32>} : memref<5x8x512xf32, #tpu.memory_space<vmem>>, vector<1x8x512xf32>,
    %c4_i32 = arith.constant 4 : i32
    %16 = arith.cmpi eq, %arg0, %c4_i32 : i32
    %17 = arith.extui %16 : i1 to i32
    %c0_i32 = arith.constant 0 : i32
    %18 = arith.cmpi ne, %17, %c0_i32 : i32
    scf.if %18 {
      %c0_10 = arith.constant 0 : index
      %c1 = arith.constant 1 : index
      %19 = vector.load %arg3[%c0_10, %c1] : memref<8x128xf32, #tpu.memory_space<vmem>>, vector<8x1xf32>
      %c0_11 = arith.constant 0 : index
      %c2 = arith.constant 2 : index
      %20 = vector.load %arg3[%c0_11, %c2] : memref<8x128xf32, #tpu.memory_space<vmem>>, vector<8x1xf32>
      %cst_12 = arith.constant 0.000000e+00 : f32
      %cst_13 = arith.constant 6.000000e+00 : f32
      %21 = vector.broadcast %cst_12 : f32 to vector<8x1xf32>
      %22 = arith.maximumf %21, %0 : vector<8x1xf32>
      %23 = vector.broadcast %cst_13 : f32 to vector<8x1xf32>
      %24 = arith.minimumf %23, %22 : vector<8x1xf32>
      %cst_14 = arith.constant 0.166666672 : f32
      %25 = vector.broadcast %cst_14 : f32 to vector<8x1xf32>
      %26 = arith.mulf %24, %25 : vector<8x1xf32>
      %c0_15 = arith.constant 0 : index
      %c0_16 = arith.constant 0 : index
      %c0_17 = arith.constant 0 : index
      %27 = vector.load %arg4[%c0_15, %c0_16, %c0_17] : memref<5x8x512xf32, #tpu.memory_space<vmem>>, vector<5x8x512xf32>
      %cst_18 = arith.constant dense<0.000000e+00> : vector<5x8xf32>
      %28 = vector.multi_reduction <add>, %27, %cst_18 [2] : vector<5x8x512xf32> to vector<5x8xf32>
      %29 = vector.shape_cast %28 : vector<5x8xf32> to vector<5x8x1xf32>
      %cst_19 = arith.constant dense<0.000000e+00> : vector<8x1xf32>
      %30 = vector.multi_reduction <add>, %29, %cst_19 [0] : vector<5x8x1xf32> to vector<8x1xf32>
      %31 = arith.mulf %27, %27 : vector<5x8x512xf32>
      %cst_20 = arith.constant dense<0.000000e+00> : vector<5x8xf32>
      %32 = vector.multi_reduction <add>, %31, %cst_20 [2] : vector<5x8x512xf32> to vector<5x8xf32>
      %33 = vector.shape_cast %32 : vector<5x8xf32> to vector<5x8x1xf32>
      %cst_21 = arith.constant dense<0.000000e+00> : vector<8x1xf32>
      %34 = vector.multi_reduction <add>, %33, %cst_21 [0] : vector<5x8x1xf32> to vector<8x1xf32>
      %cst_22 = arith.constant 3.820000e+02 : f32
      %35 = vector.broadcast %cst_22 : f32 to vector<8x1xf32>
      %36 = arith.mulf %35, %26 : vector<8x1xf32>
      %37 = arith.subf %30, %36 : vector<8x1xf32>
      %cst_23 = arith.constant 4.5913682E-4 : f32
      %38 = vector.broadcast %cst_23 : f32 to vector<8x1xf32>
      %39 = arith.mulf %37, %38 : vector<8x1xf32>
      %40 = arith.mulf %26, %26 : vector<8x1xf32>
      %cst_24 = arith.constant 3.820000e+02 : f32
      %41 = vector.broadcast %cst_24 : f32 to vector<8x1xf32>
      %42 = arith.mulf %41, %40 : vector<8x1xf32>
      %43 = arith.subf %34, %42 : vector<8x1xf32>
      %cst_25 = arith.constant 4.5913682E-4 : f32
      %44 = vector.broadcast %cst_25 : f32 to vector<8x1xf32>
      %45 = arith.mulf %43, %44 : vector<8x1xf32>
      %46 = arith.mulf %39, %39 : vector<8x1xf32>
      %47 = arith.subf %45, %46 : vector<8x1xf32>
      %cst_26 = arith.constant 9.99999974E-6 : f32
      %48 = vector.broadcast %cst_26 : f32 to vector<8x1xf32>
      %49 = arith.addf %47, %48 : vector<8x1xf32>
      %50 = math.rsqrt %49 : vector<8x1xf32>
      %51 = arith.mulf %19, %50 : vector<8x1xf32>
      %52 = arith.mulf %39, %51 : vector<8x1xf32>
      %53 = arith.subf %20, %52 : vector<8x1xf32>
      %54 = vector.shape_cast %51 : vector<8x1xf32> to vector<1x8x1xf32>
      %55 = vector.broadcast %54 : vector<1x8x1xf32> to vector<5x8x512xf32>
      %56 = arith.mulf %27, %55 : vector<5x8x512xf32>
      %57 = vector.shape_cast %53 : vector<8x1xf32> to vector<1x8x1xf32>
      %58 = vector.broadcast %57 : vector<1x8x1xf32> to vector<5x8x512xf32>
      %59 = arith.addf %56, %58 : vector<5x8x512xf32>
      %c0_27 = arith.constant 0 : index
      %c0_28 = arith.constant 0 : index
      %c0_29 = arith.constant 0 : index
      %60 = vector.load %arg4[%c0_27, %c0_28, %c0_29] : memref<5x8x512xf32, #tpu.memory_space<vmem>>, vector<5x8x512xf32>
      tpu.vector_store %arg4[%c0_27, %c0_28, %c0_29], %59 {strides = array<i32>} : memref<5x8x512xf32, #tpu.memory_space<vmem>>, vector<5x8x512xf32>,
    } else {
    }
    return
  }
  func.func @transform_0(%arg0: i32) -> (i32, i32) {
    %c0_i32 = arith.constant 0 : i32
    %c0_i32_0 = arith.constant 0 : i32
    %c0_i32_1 = arith.constant 0 : i32
    return %c0_i32, %c0_i32_0 : i32, i32
  }
  func.func @transform_1(%arg0: i32) -> (i32, i32) {
    %c0_i32 = arith.constant 0 : i32
    %c0_i32_0 = arith.constant 0 : i32
    return %c0_i32, %arg0 : i32, i32
  }
  func.func @transform_2(%arg0: i32) -> (i32, i32) {
    %c0_i32 = arith.constant 0 : i32
    %c0_i32_0 = arith.constant 0 : i32
    %c0_i32_1 = arith.constant 0 : i32
    return %c0_i32, %c0_i32_0 : i32, i32
  }
  func.func @transform_3(%arg0: i32) -> (i32, i32, i32) {
    %c0_i32 = arith.constant 0 : i32
    %c0_i32_0 = arith.constant 0 : i32
    %c0_i32_1 = arith.constant 0 : i32
    %c0_i32_2 = arith.constant 0 : i32
    return %c0_i32, %c0_i32_0, %c0_i32_1 : i32, i32, i32
  }
}

</mosaic_0001>

<llo_original>
// kernel: model_forward.1
$region0: #{model_forward.1}
  #allocation0 [shape = 'u32[]', space=smem, size = 0x4, offset = 0x4, fixed_abs, tag = 'smem constant byte address 0x4 - core index']
  #allocation1 [shape = 'u32[144,128]{1,0:T(1,128)}', space=vmem, size = 0x12000, scoped, tag = 'internal scratch']
  %s0 = inlined_call_operand.vmem [shape: bf16[8,144], index: 0, kind: input, shape index: {}]
  %s1 = inlined_call_operand.vmem [shape: bf16[144,2560], index: 1, kind: input, shape index: {}]
  %s2 = inlined_call_operand.vmem [shape: f32[8,128], index: 2, kind: input, shape index: {}]
  %s3 = inlined_call_operand.vmem [shape: f32[5,8,512], index: 3, kind: output, shape index: {}]
  %s4 = sld [smem:[#allocation0]]
  $region72: #{model_forward.1} parent=0
    _
  %s6 = ssub.s32 1, %s4
  %s7 = scalar_select 0, %s6, %s4
  $region1: #{model_forward.1} parent=0
    #allocation2 [shape = 'u8[294912]{0}', space=vmem, size = 0x48000, scoped, tag = 'input window, operand 1']
    loop: start=0, step=1, limit=7
    $region2: #{model_forward.1} parent=1 // loop_pre_header
      _
    $region3: #{model_forward.1} parent=1 // loop_header
      %s9 = sphi 0, %s13
      %p10 = scmp.ge.s32.totalorder %s9, 7
      %s17 = sphi 0, %s17
      %s19 = sphi 0, %s17
      %s20 = sphi 0, %s19
      %s34 = sphi 0, %s20
      %s40 = sphi 0, %s42
      %s43 = sphi 0, %s40
      %s44 = sphi 0, %s43
      %s60 = sphi 0, %s44
      %s64 = sphi 0, %s64
      %s66 = sphi 0, %s64
      %s67 = sphi 0, %s66
      %s81 = sphi 0, %s67
      %s85 = sphi 0, %s85
      %s87 = sphi 0, %s85
      %s88 = sphi 0, %s87
      %s102 = sphi 0, %s88
    $region4: #{model_forward.1} parent=1 // loop_header_branch
      %12 = sbr.rel (%p10) target = $region8
    $region5: #{model_forward.1} parent=1 // loop_body
      %s14 = ssub.s32 %s9, 1
      %s15 = ssub.s32 %s9, 2
      %s16 = sadd.s32 %s9, 1
      %s18 = sadd.s32 %s17, 1
      %p21 = scmp.eq.s32.totalorder %s9, 4
      %p22 = scmp.ne.s32.totalorder %s17, %s19
      %p23 = scmp.eq.s32.totalorder %s9, 0
      %p24 = por %p22, %p23
      %p25 = scmp.ne.s32.totalorder %s17, %s19
      %p26 = scmp.eq.s32.totalorder %s14, 4
      %p27 = por %p25, %p26
      %p28 = scmp.ne.s32.totalorder %s19, %s20
      %p29 = scmp.eq.s32.totalorder %s14, 0
      %p30 = por %p28, %p29
      %p31 = scmp.ne.s32.totalorder %s19, %s20
      %p32 = scmp.eq.s32.totalorder %s15, 4
      %p33 = por %p31, %p32
      %p35 = scmp.ne.s32.totalorder %s20, %s34
      %p36 = scmp.eq.s32.totalorder %s15, 0
      %p37 = por %p35, %p36
      %s38 = ssub.s32 %s9, %s16
      %p39 = scmp.eq.s32.totalorder %s38, 0
      %s41 = sadd.s32 %s40, 1
      %s42 = scalar_select %p39, %s40, %s41
      %p45 = pneg %p39
      %p46 = scmp.eq.s32.totalorder %s9, 4
      %p47 = por %p45, %p46
      %p48 = scmp.ne.s32.totalorder %s40, %s43
      %p49 = scmp.eq.s32.totalorder %s9, 0
      %p50 = por %p48, %p49
      %p51 = scmp.ne.s32.totalorder %s40, %s43
      %p52 = scmp.eq.s32.totalorder %s14, 4
      %p53 = por %p51, %p52
      %p54 = scmp.ne.s32.totalorder %s43, %s44
      %p55 = scmp.eq.s32.totalorder %s14, 0
      %p56 = por %p54, %p55
      %p57 = scmp.ne.s32.totalorder %s43, %s44
      %p58 = scmp.eq.s32.totalorder %s15, 4
      %p59 = por %p57, %p58
      %p61 = scmp.ne.s32.totalorder %s44, %s60
      %p62 = scmp.eq.s32.totalorder %s15, 0
      %p63 = por %p61, %p62
      %s65 = sadd.s32 %s64, 1
      %p68 = scmp.eq.s32.totalorder %s9, 4
      %p69 = scmp.ne.s32.totalorder %s64, %s66
      %p70 = scmp.eq.s32.totalorder %s9, 0
      %p71 = por %p69, %p70
      %p72 = scmp.ne.s32.totalorder %s64, %s66
      %p73 = scmp.eq.s32.totalorder %s14, 4
      %p74 = por %p72, %p73
      %p75 = scmp.ne.s32.totalorder %s66, %s67
      %p76 = scmp.eq.s32.totalorder %s14, 0
      %p77 = por %p75, %p76
      %p78 = scmp.ne.s32.totalorder %s66, %s67
      %p79 = scmp.eq.s32.totalorder %s15, 4
      %p80 = por %p78, %p79
      %p82 = scmp.ne.s32.totalorder %s67, %s81
      %p83 = scmp.eq.s32.totalorder %s15, 0
      %p84 = por %p82, %p83
      %s86 = sadd.s32 %s85, 1
      %p89 = scmp.eq.s32.totalorder %s9, 4
      %p90 = scmp.ne.s32.totalorder %s85, %s87
      %p91 = scmp.eq.s32.totalorder %s9, 0
      %p92 = por %p90, %p91
      %p93 = scmp.ne.s32.totalorder %s85, %s87
      %p94 = scmp.eq.s32.totalorder %s14, 4
      %p95 = por %p93, %p94
      %p96 = scmp.ne.s32.totalorder %s87, %s88
      %p97 = scmp.eq.s32.totalorder %s14, 0
      %p98 = por %p96, %p97
      %p99 = scmp.ne.s32.totalorder %s87, %s88
      %p100 = scmp.eq.s32.totalorder %s15, 4
      %p101 = por %p99, %p100
      %p103 = scmp.ne.s32.totalorder %s88, %s102
      %p104 = scmp.eq.s32.totalorder %s15, 0
      %p105 = por %p103, %p104
      %p106 = scmp.le.s32.totalorder 1, %s9
      %p107 = scmp.lt.s32.totalorder %s9, 6
      %p108 = pnand %p106, %p107
      %p109 = pneg %p108
      // Predicated region
      $region9: #{model_forward.1} parent=5 // pred_check
        _
      $region10: #{model_forward.1} parent=5 // pred_check_branch
        %111 = sbr.rel (%p108) target = $region12
      $region11: #{model_forward.1} parent=5 // pred_region
        %s112 = ssub.s32 %s9, 1
        // Predicated region
        $region13: #{model_forward.1} parent=11 // pred_check
          %p113 = pneg %p30
        $region14: #{model_forward.1} parent=11 // pred_check_branch
          %115 = sbr.rel (%p113) target = $region16
        $region15: #{model_forward.1} parent=11 // pred_region
          _
        $region16: #{model_forward.1} parent=11 // pred_fallthru
          _
        // Predicated region
        $region17: #{model_forward.1} parent=11 // pred_check
          %p116 = pneg %p77
        $region18: #{model_forward.1} parent=11 // pred_check_branch
          %118 = sbr.rel (%p116) target = $region20
        $region19: #{model_forward.1} parent=11 // pred_region
          _
        $region20: #{model_forward.1} parent=11 // pred_fallthru
          _
      $region12: #{model_forward.1} parent=5 // pred_fallthru
        _
      %p119 = scmp.lt.s32.totalorder %s9, 5
      // Predicated region
      $region21: #{model_forward.1} parent=5 // pred_check
        %p120 = pneg %p119
      $region22: #{model_forward.1} parent=5 // pred_check_branch
        %122 = sbr.rel (%p120) target = $region24
      $region23: #{model_forward.1} parent=5 // pred_region
        // Predicated region
        $region25: #{model_forward.1} parent=23 // pred_check
          %p123 = pneg %p50
        $region26: #{model_forward.1} parent=23 // pred_check_branch
          %125 = sbr.rel (%p123) target = $region28
        $region27: #{model_forward.1} parent=23 // pred_region
          %s126 = sand.u32 %s40, 1
          %s127 = sand.u32 %s40, 1
          %s128 = smul.addr %s127, 288
          %s129 = scalar_lea.vmem [#allocation2], %s128
          %s130 = smul.u32 4, %s9
          %s131 = smul.addr %s130, 4
          %s132 = scalar_lea.vmem %s1, %s131
          // Predicated region
          $region29: #{model_forward.1} parent=27 // pred_check
            _
          $region30: #{model_forward.1} parent=27 // pred_check_branch
            %134 = sbr.rel (0) target = $region32
          $region31: #{model_forward.1} parent=27 // pred_region
            // Predicated region
            $region33: #{model_forward.1} parent=31 // pred_check
              _
            $region34: #{model_forward.1} parent=31 // pred_check_branch
              %136 = sbr.rel (0) target = $region36
            $region35: #{model_forward.1} parent=31 // pred_region
              loop: start=0, step=1, limit=1
              $region37: #{model_forward.1} parent=35 // loop_pre_header
                _
              $region38: #{model_forward.1} parent=35 // loop_header
                %s138 = sphi 0, %s142
                %p139 = scmp.ge.s32.totalorder %s138, 1
                %s143 = sphi %s132, %s132
                %s144 = sphi %s129, %s129
              $region39: #{model_forward.1} parent=35 // loop_header_branch
                %141 = sbr.rel (%p139) target = $region43
              $region40: #{model_forward.1} parent=35 // loop_body
                %v145 = vld [vmem:[%s143] sm:$0xff]
                %146 = vst [vmem:[%s144] sm:$0xff] %v145
                %v147 = vld [vmem:[%s143 + $0x8] sm:$0xff]
                %148 = vst [vmem:[%s144 + $0x8] sm:$0xff] %v147
                %v149 = vld [vmem:[%s143 + $0x50] sm:$0xff]
                %150 = vst [vmem:[%s144 + $0x10] sm:$0xff] %v149
                %v151 = vld [vmem:[%s143 + $0x58] sm:$0xff]
                %152 = vst [vmem:[%s144 + $0x18] sm:$0xff] %v151
                %v153 = vld [vmem:[%s143 + $0xa0] sm:$0xff]
                %154 = vst [vmem:[%s144 + $0x20] sm:$0xff] %v153
                %v155 = vld [vmem:[%s143 + $0xa8] sm:$0xff]
                %156 = vst [vmem:[%s144 + $0x28] sm:$0xff] %v155
                %v157 = vld [vmem:[%s143 + $0xf0] sm:$0xff]
                %158 = vst [vmem:[%s144 + $0x30] sm:$0xff] %v157
                %v159 = vld [vmem:[%s143 + $0xf8] sm:$0xff]
                %160 = vst [vmem:[%s144 + $0x38] sm:$0xff] %v159
                %v161 = vld [vmem:[%s143 + $0x140] sm:$0xff]
                %162 = vst [vmem:[%s144 + $0x40] sm:$0xff] %v161
                %v163 = vld [vmem:[%s143 + $0x148] sm:$0xff]
                %164 = vst [vmem:[%s144 + $0x48] sm:$0xff] %v163
                %v165 = vld [vmem:[%s143 + $0x190] sm:$0xff]
                %166 = vst [vmem:[%s144 + $0x50] sm:$0xff] %v165
                %v167 = vld [vmem:[%s143 + $0x198] sm:$0xff]
                %168 = vst [vmem:[%s144 + $0x58] sm:$0xff] %v167
                %v169 = vld [vmem:[%s143 + $0x1e0] sm:$0xff]
                %170 = vst [vmem:[%s144 + $0x60] sm:$0xff] %v169
                %v171 = vld [vmem:[%s143 + $0x1e8] sm:$0xff]
                %172 = vst [vmem:[%s144 + $0x68] sm:$0xff] %v171
                %v173 = vld [vmem:[%s143 + $0x230] sm:$0xff]
                %174 = vst [vmem:[%s144 + $0x70] sm:$0xff] %v173
                %v175 = vld [vmem:[%s143 + $0x238] sm:$0xff]
                %176 = vst [vmem:[%s144 + $0x78] sm:$0xff] %v175
                %v177 = vld [vmem:[%s143 + $0x280] sm:$0xff]
                %178 = vst [vmem:[%s144 + $0x80] sm:$0xff] %v177
                %v179 = vld [vmem:[%s143 + $0x288] sm:$0xff]
                %180 = vst [vmem:[%s144 + $0x88] sm:$0xff] %v179
                %v181 = vld [vmem:[%s143 + $0x2d0] sm:$0xff]
                %182 = vst [vmem:[%s144 + $0x90] sm:$0xff] %v181
                %v183 = vld [vmem:[%s143 + $0x2d8] sm:$0xff]
                %184 = vst [vmem:[%s144 + $0x98] sm:$0xff] %v183
                %v185 = vld [vmem:[%s143 + $0x320] sm:$0xff]
                %186 = vst [vmem:[%s144 + $0xa0] sm:$0xff] %v185
                %v187 = vld [vmem:[%s143 + $0x328] sm:$0xff]
                %188 = vst [vmem:[%s144 + $0xa8] sm:$0xff] %v187
                %v189 = vld [vmem:[%s143 + $0x370] sm:$0xff]
                %190 = vst [vmem:[%s144 + $0xb0] sm:$0xff] %v189
                %v191 = vld [vmem:[%s143 + $0x378] sm:$0xff]
                %192 = vst [vmem:[%s144 + $0xb8] sm:$0xff] %v191
                %v193 = vld [vmem:[%s143 + $0x3c0] sm:$0xff]
                %194 = vst [vmem:[%s144 + $0xc0] sm:$0xff] %v193
                %v195 = vld [vmem:[%s143 + $0x3c8] sm:$0xff]
                %196 = vst [vmem:[%s144 + $0xc8] sm:$0xff] %v195
                %v197 = vld [vmem:[%s143 + $0x410] sm:$0xff]
                %198 = vst [vmem:[%s144 + $0xd0] sm:$0xff] %v197
                %v199 = vld [vmem:[%s143 + $0x418] sm:$0xff]
                %200 = vst [vmem:[%s144 + $0xd8] sm:$0xff] %v199
                %v201 = vld [vmem:[%s143 + $0x460] sm:$0xff]
                %202 = vst [vmem:[%s144 + $0xe0] sm:$0xff] %v201
                %v203 = vld [vmem:[%s143 + $0x468] sm:$0xff]
                %204 = vst [vmem:[%s144 + $0xe8] sm:$0xff] %v203
                %v205 = vld [vmem:[%s143 + $0x4b0] sm:$0xff]
                %206 = vst [vmem:[%s144 + $0xf0] sm:$0xff] %v205
                %v207 = vld [vmem:[%s143 + $0x4b8] sm:$0xff]
                %208 = vst [vmem:[%s144 + $0xf8] sm:$0xff] %v207
                %v209 = vld [vmem:[%s143 + $0x500] sm:$0xff]
                %210 = vst [vmem:[%s144 + $0x100] sm:$0xff] %v209
                %v211 = vld [vmem:[%s143 + $0x508] sm:$0xff]
                %212 = vst [vmem:[%s144 + $0x108] sm:$0xff] %v211
                %v213 = vld [vmem:[%s143 + $0x550] sm:$0xff]
                %214 = vst [vmem:[%s144 + $0x110] sm:$0xff] %v213
                %v215 = vld [vmem:[%s143 + $0x558] sm:$0xff]
                %216 = vst [vmem:[%s144 + $0x118] sm:$0xff] %v215
              $region41: #{model_forward.1} parent=35 // loop_footer
                %s142 = sadd.s32 1, %s138
              $region42: #{model_forward.1} parent=35 // loop_footer_branch
                %137 = sbr.rel target = $region38
              $region43: #{model_forward.1} parent=35 // loop_exit
                _
            $region36: #{model_forward.1} parent=31 // pred_fallthru
              _
            // Predicated region
            $region44: #{model_forward.1} parent=31 // pred_check
              _
            $region45: #{model_forward.1} parent=31 // pred_check_branch
              %218 = sbr.rel target = $region47
            $region46: #{model_forward.1} parent=31 // pred_region
              _
            $region47: #{model_forward.1} parent=31 // pred_fallthru
              _
          $region32: #{model_forward.1} parent=27 // pred_fallthru
            _
          %219 = vnop
        $region28: #{model_forward.1} parent=23 // pred_fallthru
          _
      $region24: #{model_forward.1} parent=5 // pred_fallthru
        _
      %p220 = scmp.le.s32.totalorder 1, %s9
      %p221 = scmp.lt.s32.totalorder %s9, 6
      %p222 = pnand %p220, %p221
      %p223 = pneg %p222
      // Predicated region
      $region48: #{model_forward.1} parent=5 // pred_check
        _
      $region49: #{model_forward.1} parent=5 // pred_check_branch
        %225 = sbr.rel (%p222) target = $region51
      $region50: #{model_forward.1} parent=5 // pred_region
        %s226 = ssub.s32 %s9, 1
        %s227 = sand.u32 %s43, 1
        %s228 = sand.u32 %s43, 1
        %s229 = smul.addr %s228, 288
        %s230 = scalar_lea.vmem [#allocation2], %s229
        // Predicated region
        $region52: #{model_forward.1} parent=50 // pred_check
          %p231 = pneg %p56
        $region53: #{model_forward.1} parent=50 // pred_check_branch
          %233 = sbr.rel (%p231) target = $region55
        $region54: #{model_forward.1} parent=50 // pred_region
          _
        $region55: #{model_forward.1} parent=50 // pred_fallthru
          _
        %p234 = pneg %p30
        %p235 = pneg %p27
        %s236 = sand.u32 %s43, 1
        %s237 = sand.u32 %s43, 1
        %s238 = smul.addr %s237, 288
        %s239 = scalar_lea.vmem [#allocation2], %s238
        %p240 = pneg %p56
        %p241 = pneg %p53
        %p242 = pneg %p77
        %p243 = pneg %p74
        %p244 = pneg %p98
        %p245 = pneg %p95
        %s246 = smul.u32 4, %s14
        %v248 = vld [vmem:[%s2] sm:$0xff]
        %v249 = vld [vmem:[%s0] sm:$0xff]
        %v250 = vld [vmem:[%s230] sm:$0xff]
        %v251 = vld [vmem:[%s230 + $0x8] sm:$0xff]
        %v252 = vld [vmem:[%s230 + $0x10] sm:$0xff]
        %v253 = vld [vmem:[%s230 + $0x18] sm:$0xff]
        %v254 = vld [vmem:[%s230 + $0x20] sm:$0xff]
        %v255 = vld [vmem:[%s230 + $0x28] sm:$0xff]
        %v256 = vld [vmem:[%s230 + $0x30] sm:$0xff]
        %v257 = vld [vmem:[%s230 + $0x38] sm:$0xff]
        %v258 = vld [vmem:[%s230 + $0x40] sm:$0xff]
        %v259 = vld [vmem:[%s230 + $0x48] sm:$0xff]
        %v260 = vld [vmem:[%s230 + $0x50] sm:$0xff]
        %v261 = vld [vmem:[%s230 + $0x58] sm:$0xff]
        %v262 = vld [vmem:[%s230 + $0x60] sm:$0xff]
        %v263 = vld [vmem:[%s230 + $0x68] sm:$0xff]
        %v264 = vld [vmem:[%s230 + $0x70] sm:$0xff]
        %v265 = vld [vmem:[%s230 + $0x78] sm:$0xff]
        %v266 = vld [vmem:[%s230 + $0x80] sm:$0xff]
        %v267 = vld [vmem:[%s230 + $0x88] sm:$0xff]
        %v268 = vld [vmem:[%s230 + $0x90] sm:$0xff]
        %v269 = vld [vmem:[%s230 + $0x98] sm:$0xff]
        %v270 = vld [vmem:[%s230 + $0xa0] sm:$0xff]
        %v271 = vld [vmem:[%s230 + $0xa8] sm:$0xff]
        %v272 = vld [vmem:[%s230 + $0xb0] sm:$0xff]
        %v273 = vld [vmem:[%s230 + $0xb8] sm:$0xff]
        %v274 = vld [vmem:[%s230 + $0xc0] sm:$0xff]
        %v275 = vld [vmem:[%s230 + $0xc8] sm:$0xff]
        %v276 = vld [vmem:[%s230 + $0xd0] sm:$0xff]
        %v277 = vld [vmem:[%s230 + $0xd8] sm:$0xff]
        %v278 = vld [vmem:[%s230 + $0xe0] sm:$0xff]
        %v279 = vld [vmem:[%s230 + $0xe8] sm:$0xff]
        %v280 = vld [vmem:[%s230 + $0xf0] sm:$0xff]
        %v281 = vld [vmem:[%s230 + $0xf8] sm:$0xff]
        %v282 = vld [vmem:[%s230 + $0x100] sm:$0xff]
        %v283 = vld [vmem:[%s230 + $0x108] sm:$0xff]
        %v284 = vld [vmem:[%s230 + $0x110] sm:$0xff]
        %v285 = vld [vmem:[%s230 + $0x118] sm:$0xff]
        %287 = vset.pattern.permute.xlu0 0
        %288 = vperm.xlu0 %287, %v248
        %v289 = vpop.permute.xlu0 %288
        %v292 = vunpack.c.l.b16 %v249
        %v293 = vunpack.c.h.b16 %v249
        %v294 = vpack.c.b16 %v292, %v292
        %v295 = vpack.c.b16 %v293, %v293
        %v333 = vunpack.c.l.b16 %v250
        %v334 = vunpack.c.h.b16 %v250
        %v335 = vunpack.c.l.b16 %v251
        %v336 = vunpack.c.h.b16 %v251
        %v337 = vunpack.c.l.b16 %v252
        %v338 = vunpack.c.h.b16 %v252
        %v339 = vunpack.c.l.b16 %v253
        %v340 = vunpack.c.h.b16 %v253
        %v341 = vunpack.c.l.b16 %v254
        %v342 = vunpack.c.h.b16 %v254
        %v343 = vunpack.c.l.b16 %v255
        %v344 = vunpack.c.h.b16 %v255
        %v345 = vunpack.c.l.b16 %v256
        %v346 = vunpack.c.h.b16 %v256
        %v347 = vunpack.c.l.b16 %v257
        %v348 = vunpack.c.h.b16 %v257
        %v349 = vunpack.c.l.b16 %v258
        %v350 = vunpack.c.h.b16 %v258
        %v351 = vunpack.c.l.b16 %v259
        %v352 = vunpack.c.h.b16 %v259
        %v353 = vunpack.c.l.b16 %v260
        %v354 = vunpack.c.h.b16 %v260
        %v355 = vunpack.c.l.b16 %v261
        %v356 = vunpack.c.h.b16 %v261
        %v357 = vunpack.c.l.b16 %v262
        %v358 = vunpack.c.h.b16 %v262
        %v359 = vunpack.c.l.b16 %v263
        %v360 = vunpack.c.h.b16 %v263
        %v361 = vunpack.c.l.b16 %v264
        %v362 = vunpack.c.h.b16 %v264
        %v363 = vunpack.c.l.b16 %v265
        %v364 = vunpack.c.h.b16 %v265
        %v365 = vunpack.c.l.b16 %v266
        %v366 = vunpack.c.h.b16 %v266
        %v367 = vunpack.c.l.b16 %v267
        %v368 = vunpack.c.h.b16 %v267
        %v369 = vunpack.c.l.b16 %v268
        %v370 = vunpack.c.h.b16 %v268
        %v371 = vunpack.c.l.b16 %v269
        %v372 = vunpack.c.h.b16 %v269
        %v373 = vunpack.c.l.b16 %v270
        %v374 = vunpack.c.h.b16 %v270
        %v375 = vunpack.c.l.b16 %v271
        %v376 = vunpack.c.h.b16 %v271
        %v377 = vunpack.c.l.b16 %v272
        %v378 = vunpack.c.h.b16 %v272
        %v379 = vunpack.c.l.b16 %v273
        %v380 = vunpack.c.h.b16 %v273
        %v381 = vunpack.c.l.b16 %v274
        %v382 = vunpack.c.h.b16 %v274
        %v383 = vunpack.c.l.b16 %v275
        %v384 = vunpack.c.h.b16 %v275
        %v385 = vunpack.c.l.b16 %v276
        %v386 = vunpack.c.h.b16 %v276
        %v387 = vunpack.c.l.b16 %v277
        %v388 = vunpack.c.h.b16 %v277
        %v389 = vunpack.c.l.b16 %v278
        %v390 = vunpack.c.h.b16 %v278
        %v391 = vunpack.c.l.b16 %v279
        %v392 = vunpack.c.h.b16 %v279
        %v393 = vunpack.c.l.b16 %v280
        %v394 = vunpack.c.h.b16 %v280
        %v395 = vunpack.c.l.b16 %v281
        %v396 = vunpack.c.h.b16 %v281
        %v397 = vunpack.c.l.b16 %v282
        %v398 = vunpack.c.h.b16 %v282
        %v399 = vunpack.c.l.b16 %v283
        %v400 = vunpack.c.h.b16 %v283
        %v401 = vunpack.c.l.b16 %v284
        %v402 = vunpack.c.h.b16 %v284
        %v403 = vunpack.c.l.b16 %v285
        %v404 = vunpack.c.h.b16 %v285
        %v405 = vpack.c.b16 %v337, %v333
        %v406 = vpack.c.b16 %v338, %v334
        %v407 = vpack.c.b16 %v339, %v335
        %v408 = vpack.c.b16 %v340, %v336
        %v409 = vpack.c.b16 %v345, %v341
        %v410 = vpack.c.b16 %v346, %v342
        %v411 = vpack.c.b16 %v347, %v343
        %v412 = vpack.c.b16 %v348, %v344
        %v413 = vpack.c.b16 %v353, %v349
        %v414 = vpack.c.b16 %v354, %v350
        %v415 = vpack.c.b16 %v355, %v351
        %v416 = vpack.c.b16 %v356, %v352
        %v417 = vpack.c.b16 %v361, %v357
        %v418 = vpack.c.b16 %v362, %v358
        %v419 = vpack.c.b16 %v363, %v359
        %v420 = vpack.c.b16 %v364, %v360
        %v421 = vpack.c.b16 %v369, %v365
        %v422 = vpack.c.b16 %v370, %v366
        %v423 = vpack.c.b16 %v371, %v367
        %v424 = vpack.c.b16 %v372, %v368
        %v425 = vpack.c.b16 %v377, %v373
        %v426 = vpack.c.b16 %v378, %v374
        %v427 = vpack.c.b16 %v379, %v375
        %v428 = vpack.c.b16 %v380, %v376
        %v429 = vpack.c.b16 %v385, %v381
        %v430 = vpack.c.b16 %v386, %v382
        %v431 = vpack.c.b16 %v387, %v383
        %v432 = vpack.c.b16 %v388, %v384
        %v433 = vpack.c.b16 %v393, %v389
        %v434 = vpack.c.b16 %v394, %v390
        %v435 = vpack.c.b16 %v395, %v391
        %v436 = vpack.c.b16 %v396, %v392
        %v437 = vpack.c.b16 %v401, %v397
        %v438 = vpack.c.b16 %v402, %v398
        %v439 = vpack.c.b16 %v403, %v399
        %v440 = vpack.c.b16 %v404, %v400
        %vm477 = vcmask 130048
        %v479 = vsel %vm477, %v295, 0
        %481 = vmatprep.subr.bf16.mxu0 %v406
        %482 = vmatpush1.bf16.msra.mxu0 %v405
        %483 = vmatprep.subr.bf16.mxu0 %v410
        %484 = vmatpush1.bf16.msra.mxu0 %v409
        %485 = vmatprep.subr.bf16.mxu0 %v414
        %486 = vmatpush1.bf16.msra.mxu0 %v413
        %487 = vmatprep.subr.bf16.mxu0 %v418
        %488 = vmatpush1.bf16.msra.mxu0 %v417
        %489 = vmatprep.subr.bf16.mxu0 %v422
        %490 = vmatpush1.bf16.msra.mxu0 %v421
        %491 = vmatprep.subr.bf16.mxu0 %v426
        %492 = vmatpush1.bf16.msra.mxu0 %v425
        %493 = vmatprep.subr.bf16.mxu0 %v430
        %494 = vmatpush1.bf16.msra.mxu0 %v429
        %495 = vmatprep.subr.bf16.mxu0 %v434
        %496 = vmatpush1.bf16.msra.mxu0 %v433
        %497 = vmatprep.subr.bf16.mxu0 %v438
        %498 = vmatpush1.bf16.msra.mxu0 %v437
        %499 = vmatprep.subr.bf16.mxu0 0
        %500 = vmatpush1.bf16.msra.mxu0 0
        %501 = vmatprep.subr.bf16.mxu0 0
        %502 = vmatpush1.bf16.msra.mxu0 0
        %503 = vmatprep.subr.bf16.mxu0 0
        %504 = vmatpush1.bf16.msra.mxu0 0
        %505 = vmatprep.subr.bf16.mxu0 0
        %506 = vmatpush1.bf16.msra.mxu0 0
        %507 = vmatprep.subr.bf16.mxu0 0
        %508 = vmatpush1.bf16.msra.mxu0 0
        %509 = vmatprep.subr.bf16.mxu0 0
        %510 = vmatpush1.bf16.msra.mxu0 0
        %511 = vmatprep.subr.bf16.mxu0 0
        %512 = vmatpush1.bf16.msra.mxu0 0
        %513 = vmatprep.mubr.bf16.mxu0 %v479
        %514 = vmatmul.mubr.bf16.gmra.mrb[0].mxu0 %v294
        %v515 = vpop.f32.mrb[0].mxu0
        %v516 = vadd.f32 %v289, %v515
        %v517 = vpop.f32.mrb[0].mxu0
        %v518 = vadd.f32 %v289, %v517
        %v519 = vpop.f32.mrb[0].mxu0
        %v520 = vpop.f32.mrb[0].mxu0
        %521 = vdwg.mxu0
        %522 = vmatprep.subr.bf16.mxu0 %v408
        %523 = vmatpush1.bf16.msra.mxu0 %v407
        %524 = vmatprep.subr.bf16.mxu0 %v412
        %525 = vmatpush1.bf16.msra.mxu0 %v411
        %526 = vmatprep.subr.bf16.mxu0 %v416
        %527 = vmatpush1.bf16.msra.mxu0 %v415
        %528 = vmatprep.subr.bf16.mxu0 %v420
        %529 = vmatpush1.bf16.msra.mxu0 %v419
        %530 = vmatprep.subr.bf16.mxu0 %v424
        %531 = vmatpush1.bf16.msra.mxu0 %v423
        %532 = vmatprep.subr.bf16.mxu0 %v428
        %533 = vmatpush1.bf16.msra.mxu0 %v427
        %534 = vmatprep.subr.bf16.mxu0 %v432
        %535 = vmatpush1.bf16.msra.mxu0 %v431
        %536 = vmatprep.subr.bf16.mxu0 %v436
        %537 = vmatpush1.bf16.msra.mxu0 %v435
        %538 = vmatprep.subr.bf16.mxu0 %v440
        %539 = vmatpush1.bf16.msra.mxu0 %v439
        %540 = vmatprep.subr.bf16.mxu0 0
        %541 = vmatpush1.bf16.msra.mxu0 0
        %542 = vmatprep.subr.bf16.mxu0 0
        %543 = vmatpush1.bf16.msra.mxu0 0
        %544 = vmatprep.subr.bf16.mxu0 0
        %545 = vmatpush1.bf16.msra.mxu0 0
        %546 = vmatprep.subr.bf16.mxu0 0
        %547 = vmatpush1.bf16.msra.mxu0 0
        %548 = vmatprep.subr.bf16.mxu0 0
        %549 = vmatpush1.bf16.msra.mxu0 0
        %550 = vmatprep.subr.bf16.mxu0 0
        %551 = vmatpush1.bf16.msra.mxu0 0
        %552 = vmatprep.subr.bf16.mxu0 0
        %553 = vmatpush1.bf16.msra.mxu0 0
        %554 = vmatprep.mubr.bf16.mxu0 %v479
        %555 = vmatmul.mubr.bf16.gmra.mrb[0].mxu0 %v294
        %v556 = vpop.f32.mrb[0].mxu0
        %v557 = vadd.f32 %v289, %v556
        %v558 = vpop.f32.mrb[0].mxu0
        %v559 = vadd.f32 %v289, %v558
        %v560 = vpop.f32.mrb[0].mxu0
        %v561 = vpop.f32.mrb[0].mxu0
        %562 = vdwg.mxu0
        %v563 = vmax.f32 %v516, 0.0
        %v564 = vmax.f32 %v518, 0.0
        %v565 = vmax.f32 %v557, 0.0
        %v566 = vmax.f32 %v559, 0.0
        %v567 = vmin.f32 %v563, 6.0
        %v568 = vmin.f32 %v564, 6.0
        %v569 = vmin.f32 %v565, 6.0
        %v570 = vmin.f32 %v566, 6.0
        %v571 = vmul.f32 %v567, 0.16666667
        %v572 = vmul.f32 %v568, 0.16666667
        %v573 = vmul.f32 %v569, 0.16666667
        %v574 = vmul.f32 %v570, 0.16666667
        %s575 = smul.u32 %s14, 4
        %s576 = smul.addr %s575, 8
        %s577 = scalar_lea.vmem %s3, %s576
        %578 = vst [vmem:[%s577] sm:$0xff] %v571
        %579 = vst [vmem:[%s577 + $0x8] sm:$0xff] %v572
        %580 = vst [vmem:[%s577 + $0x10] sm:$0xff] %v573
        %581 = vst [vmem:[%s577 + $0x18] sm:$0xff] %v574
        %p582 = scmp.eq.s32.totalorder %s14, 4
        // Predicated region
        $region56: #{model_forward.1} parent=50 // pred_check
          %p583 = pneg %p582
        $region57: #{model_forward.1} parent=50 // pred_check_branch
          %585 = sbr.rel (%p583) target = $region59
        $region58: #{model_forward.1} parent=50 // pred_region
          %v586 = vld [vmem:[%s2] sm:$0xff]
          %v587 = vmax.f32 %v248, 0.0
          %v588 = vmin.f32 %v587, 6.0
          %v589 = vmul.f32 %v588, 0.16666667
          %v590 = vld [vmem:[%s3] sm:$0xff]
          %v591 = vld [vmem:[%s3 + $0x8] sm:$0xff]
          %v592 = vld [vmem:[%s3 + $0x10] sm:$0xff]
          %v593 = vld [vmem:[%s3 + $0x18] sm:$0xff]
          %v594 = vld [vmem:[%s3 + $0x20] sm:$0xff]
          %v595 = vld [vmem:[%s3 + $0x28] sm:$0xff]
          %v596 = vld [vmem:[%s3 + $0x30] sm:$0xff]
          %v597 = vld [vmem:[%s3 + $0x38] sm:$0xff]
          %v598 = vld [vmem:[%s3 + $0x40] sm:$0xff]
          %v599 = vld [vmem:[%s3 + $0x48] sm:$0xff]
          %v600 = vld [vmem:[%s3 + $0x50] sm:$0xff]
          %v601 = vld [vmem:[%s3 + $0x58] sm:$0xff]
          %v602 = vld [vmem:[%s3 + $0x60] sm:$0xff]
          %v603 = vld [vmem:[%s3 + $0x68] sm:$0xff]
          %v604 = vld [vmem:[%s3 + $0x70] sm:$0xff]
          %v605 = vld [vmem:[%s3 + $0x78] sm:$0xff]
          %v606 = vld [vmem:[%s3 + $0x80] sm:$0xff]
          %v607 = vld [vmem:[%s3 + $0x88] sm:$0xff]
          %v608 = vld [vmem:[%s3 + $0x90] sm:$0xff]
          %v609 = vld [vmem:[%s3 + $0x98] sm:$0xff]
          %v610 = vadd.f32 %v590, %v591
          %v611 = vadd.f32 %v610, %v592
          %v612 = vadd.f32 %v611, %v593
          %613 = vadd.xlane.f32.xlu0 %v612
          %v614 = vpop.xlane.xlu0 %613
          %v615 = vadd.f32 %v594, %v595
          %v616 = vadd.f32 %v615, %v596
          %v617 = vadd.f32 %v616, %v597
          %618 = vadd.xlane.f32.xlu0 %v617
          %v619 = vpop.xlane.xlu0 %618
          %v620 = vadd.f32 %v598, %v599
          %v621 = vadd.f32 %v620, %v600
          %v622 = vadd.f32 %v621, %v601
          %623 = vadd.xlane.f32.xlu0 %v622
          %v624 = vpop.xlane.xlu0 %623
          %v625 = vadd.f32 %v602, %v603
          %v626 = vadd.f32 %v625, %v604
          %v627 = vadd.f32 %v626, %v605
          %628 = vadd.xlane.f32.xlu0 %v627
          %v629 = vpop.xlane.xlu0 %628
          %v630 = vadd.f32 %v606, %v607
          %v631 = vadd.f32 %v630, %v608
          %v632 = vadd.f32 %v631, %v609
          %633 = vadd.xlane.f32.xlu0 %v632
          %v634 = vpop.xlane.xlu0 %633
          %v635 = vadd.f32 %v614, %v619
          %v636 = vadd.f32 %v635, %v624
          %v637 = vadd.f32 %v636, %v629
          %v638 = vadd.f32 %v637, %v634
          %v639 = vmul.f32 %v590, %v590
          %v640 = vmul.f32 %v591, %v591
          %v641 = vmul.f32 %v592, %v592
          %v642 = vmul.f32 %v593, %v593
          %v643 = vmul.f32 %v594, %v594
          %v644 = vmul.f32 %v595, %v595
          %v645 = vmul.f32 %v596, %v596
          %v646 = vmul.f32 %v597, %v597
          %v647 = vmul.f32 %v598, %v598
          %v648 = vmul.f32 %v599, %v599
          %v649 = vmul.f32 %v600, %v600
          %v650 = vmul.f32 %v601, %v601
          %v651 = vmul.f32 %v602, %v602
          %v652 = vmul.f32 %v603, %v603
          %v653 = vmul.f32 %v604, %v604
          %v654 = vmul.f32 %v605, %v605
          %v655 = vmul.f32 %v606, %v606
          %v656 = vmul.f32 %v607, %v607
          %v657 = vmul.f32 %v608, %v608
          %v658 = vmul.f32 %v609, %v609
          %v659 = vadd.f32 %v639, %v640
          %v660 = vadd.f32 %v659, %v641
          %v661 = vadd.f32 %v660, %v642
          %662 = vadd.xlane.f32.xlu0 %v661
          %v663 = vpop.xlane.xlu0 %662
          %v664 = vadd.f32 %v643, %v644
          %v665 = vadd.f32 %v664, %v645
          %v666 = vadd.f32 %v665, %v646
          %667 = vadd.xlane.f32.xlu0 %v666
          %v668 = vpop.xlane.xlu0 %667
          %v669 = vadd.f32 %v647, %v648
          %v670 = vadd.f32 %v669, %v649
          %v671 = vadd.f32 %v670, %v650
          %672 = vadd.xlane.f32.xlu0 %v671
          %v673 = vpop.xlane.xlu0 %672
          %v674 = vadd.f32 %v651, %v652
          %v675 = vadd.f32 %v674, %v653
          %v676 = vadd.f32 %v675, %v654
          %677 = vadd.xlane.f32.xlu0 %v676
          %v678 = vpop.xlane.xlu0 %677
          %v679 = vadd.f32 %v655, %v656
          %v680 = vadd.f32 %v679, %v657
          %v681 = vadd.f32 %v680, %v658
          %682 = vadd.xlane.f32.xlu0 %v681
          %v683 = vpop.xlane.xlu0 %682
          %v684 = vadd.f32 %v663, %v668
          %v685 = vadd.f32 %v684, %v673
          %v686 = vadd.f32 %v685, %v678
          %v687 = vadd.f32 %v686, %v683
          %v688 = vmul.f32 %v589, 382.0
          %v689 = vsub.f32 %v638, %v688
          %v690 = vmul.f32 %v689, 0.00045913682
          %v691 = vmul.f32 %v589, %v589
          %v692 = vmul.f32 %v691, 382.0
          %v693 = vsub.f32 %v687, %v692
          %v694 = vmul.f32 %v693, 0.00045913682
          %v695 = vmul.f32 %v690, %v690
          %v696 = vsub.f32 %v694, %v695
          %v697 = vadd.f32 %v696, 1e-05
          %v698 = vrsqrt.pop %v697
          %700 = vrot.lane.b32.xlu0 %v698, 1
          %v701 = vpop.permute.xlu0 %700
          %v703 = vmul.f32 %v586, %v701
          %705 = vrot.lane.b32.xlu0 %v703, 127
          %v706 = vpop.permute.xlu0 %705
          %v708 = vmul.f32 %v690, %v706
          %710 = vrot.lane.b32.xlu0 %v708, 2
          %v711 = vpop.permute.xlu0 %710
          %v713 = vsub.f32 %v586, %v711
          %714 = vset.pattern.permute.xlu0 1
          %715 = vperm.xlu0 %714, %v703
          %v716 = vpop.permute.xlu0 %715
          %v718 = vmul.f32 %v590, %v716
          %v719 = vmul.f32 %v591, %v716
          %v720 = vmul.f32 %v592, %v716
          %v721 = vmul.f32 %v593, %v716
          %v722 = vmul.f32 %v594, %v716
          %v723 = vmul.f32 %v595, %v716
          %v724 = vmul.f32 %v596, %v716
          %v725 = vmul.f32 %v597, %v716
          %v726 = vmul.f32 %v598, %v716
          %v727 = vmul.f32 %v599, %v716
          %v728 = vmul.f32 %v600, %v716
          %v729 = vmul.f32 %v601, %v716
          %v730 = vmul.f32 %v602, %v716
          %v731 = vmul.f32 %v603, %v716
          %v732 = vmul.f32 %v604, %v716
          %v733 = vmul.f32 %v605, %v716
          %v734 = vmul.f32 %v606, %v716
          %v735 = vmul.f32 %v607, %v716
          %v736 = vmul.f32 %v608, %v716
          %v737 = vmul.f32 %v609, %v716
          %739 = vset.pattern.permute.xlu0 2
          %740 = vperm.xlu0 %739, %v713
          %v741 = vpop.permute.xlu0 %740
          %v743 = vadd.f32 %v718, %v741
          %v744 = vadd.f32 %v719, %v741
          %v745 = vadd.f32 %v720, %v741
          %v746 = vadd.f32 %v721, %v741
          %v747 = vadd.f32 %v722, %v741
          %v748 = vadd.f32 %v723, %v741
          %v749 = vadd.f32 %v724, %v741
          %v750 = vadd.f32 %v725, %v741
          %v751 = vadd.f32 %v726, %v741
          %v752 = vadd.f32 %v727, %v741
          %v753 = vadd.f32 %v728, %v741
          %v754 = vadd.f32 %v729, %v741
          %v755 = vadd.f32 %v730, %v741
          %v756 = vadd.f32 %v731, %v741
          %v757 = vadd.f32 %v732, %v741
          %v758 = vadd.f32 %v733, %v741
          %v759 = vadd.f32 %v734, %v741
          %v760 = vadd.f32 %v735, %v741
          %v761 = vadd.f32 %v736, %v741
          %v762 = vadd.f32 %v737, %v741
          %763 = vst [vmem:[%s3] sm:$0xff] %v743
          %764 = vst [vmem:[%s3 + $0x8] sm:$0xff] %v744
          %765 = vst [vmem:[%s3 + $0x10] sm:$0xff] %v745
          %766 = vst [vmem:[%s3 + $0x18] sm:$0xff] %v746
          %767 = vst [vmem:[%s3 + $0x20] sm:$0xff] %v747
          %768 = vst [vmem:[%s3 + $0x28] sm:$0xff] %v748
          %769 = vst [vmem:[%s3 + $0x30] sm:$0xff] %v749
          %770 = vst [vmem:[%s3 + $0x38] sm:$0xff] %v750
          %771 = vst [vmem:[%s3 + $0x40] sm:$0xff] %v751
          %772 = vst [vmem:[%s3 + $0x48] sm:$0xff] %v752
          %773 = vst [vmem:[%s3 + $0x50] sm:$0xff] %v753
          %774 = vst [vmem:[%s3 + $0x58] sm:$0xff] %v754
          %775 = vst [vmem:[%s3 + $0x60] sm:$0xff] %v755
          %776 = vst [vmem:[%s3 + $0x68] sm:$0xff] %v756
          %777 = vst [vmem:[%s3 + $0x70] sm:$0xff] %v757
          %778 = vst [vmem:[%s3 + $0x78] sm:$0xff] %v758
          %779 = vst [vmem:[%s3 + $0x80] sm:$0xff] %v759
          %780 = vst [vmem:[%s3 + $0x88] sm:$0xff] %v760
          %781 = vst [vmem:[%s3 + $0x90] sm:$0xff] %v761
          %782 = vst [vmem:[%s3 + $0x98] sm:$0xff] %v762
        $region59: #{model_forward.1} parent=50 // pred_fallthru
          _
        // Predicated region
        $region60: #{model_forward.1} parent=50 // pred_check
          %p783 = pneg %p95
        $region61: #{model_forward.1} parent=50 // pred_check_branch
          %785 = sbr.rel (%p783) target = $region63
        $region62: #{model_forward.1} parent=50 // pred_region
          _
        $region63: #{model_forward.1} parent=50 // pred_fallthru
          _
        // Predicated region
        $region64: #{model_forward.1} parent=50 // pred_check
          %p786 = pneg %p95
        $region65: #{model_forward.1} parent=50 // pred_check_branch
          %788 = sbr.rel (%p786) target = $region67
        $region66: #{model_forward.1} parent=50 // pred_region
          _
        $region67: #{model_forward.1} parent=50 // pred_fallthru
          _
      $region51: #{model_forward.1} parent=5 // pred_fallthru
        _
      %p789 = scmp.le.s32.totalorder 2, %s9
      // Predicated region
      $region68: #{model_forward.1} parent=5 // pred_check
        %p790 = pneg %p789
      $region69: #{model_forward.1} parent=5 // pred_check_branch
        %792 = sbr.rel (%p790) target = $region71
      $region70: #{model_forward.1} parent=5 // pred_region
        %s793 = ssub.s32 %s9, 2
      $region71: #{model_forward.1} parent=5 // pred_fallthru
        _
    $region6: #{model_forward.1} parent=1 // loop_footer
      %s13 = sadd.s32 1, %s9
    $region7: #{model_forward.1} parent=1 // loop_footer_branch
      %8 = sbr.rel target = $region3
    $region8: #{model_forward.1} parent=1 // loop_exit
      _

</llo_original>
